<compile_context>
chip_gen: v6e
topology: v6e:2x2x1
jax: 0.10.0
libtpu: 0.0.40
codegen_flags: <defaults>
</compile_context>

<pallas_src>
import numpy as np
import jax
import jax.numpy as jnp
from jax import lax
from jax.experimental import pallas as pl
from jax.experimental.pallas import tpu as pltpu

BN_EPS = 1e-5
LRELU_SLOPE = 0.2
SELU_ALPHA = 1.6732632423543772
SELU_SCALE = 1.0507009873554805


def _round_up(x, m):
    return ((x + m - 1) // m) * m


def _make_conv_kernel(cout, sp_out, tap_shifts, n_groups, kcg, compute_dtype):
    """Per-(batch, channel-group) body.

    x_ref     : (1, KCg, SP_in)    raw space-to-depth input slab (flat spatial on lanes)
    scale_ref : (KCg, 1)  f32      folded BN scale  (gamma * rsqrt(var + eps))
    shift_ref : (KCg, 1)  f32      folded BN shift  (beta - mean * scale)
    w_ref     : (4, Cout, KC_pad)  tap-packed conv weights (full block, constant index)
    o_ref     : (1, Cout, SP_out)  f32; resident accumulator across the channel-group axis
    """

    def kernel(x_ref, scale_ref, shift_ref, w_ref, o_ref):
        cg = pl.program_id(1)

        # BN affine + LeakyReLU applied once per streamed element (1x VALU work).
        x = x_ref[0].astype(jnp.float32)                       # (KCg, SP_in)
        z = x * scale_ref[...] + shift_ref[...]
        z = jnp.where(z > 0, z, LRELU_SLOPE * z).astype(compute_dtype)

        acc = jnp.zeros((cout, sp_out), jnp.float32)
        for t, d in enumerate(tap_shifts):                     # 4 static taps of the k=2,s=1 conv
            if n_groups == 1:
                w_t = w_ref[t]                                 # (Cout, KCg)
            else:
                w_t = w_ref[t, :, pl.ds(cg * kcg, kcg)]
            acc = acc + jnp.dot(w_t, z[:, d:d + sp_out],
                                preferred_element_type=jnp.float32)

        if n_groups == 1:
            o_ref[0] = acc
        else:
            @pl.when(cg == 0)
            def _init():
                o_ref[...] = jnp.zeros_like(o_ref)
            o_ref[0] += acc

    return kernel


def unitglobalnetdown_forward(xu, xg, params, *, use_bf16=False):
    """xu: (B, Cin, H, W) NCHW, xg: (B, Cin)  ->  (x4u NCHW, x3g)."""
    B, C, H, W = xu.shape
    assert H % 2 == 0 and W % 2 == 0, "k=4,s=2 space-to-depth path assumes even H, W"
    Cout = params["conv_w"].shape[0]
    H2, W2 = H // 2, W // 2
    OH, OW = H2 - 1, W2 - 1            # = (H-4)//2 + 1, valid conv, k=4 s=2 p=0
    SP = H2 * W2
    KC = 4 * C

    compute_dtype = jnp.bfloat16 if use_bf16 else jnp.float32
    isize = jnp.dtype(compute_dtype).itemsize

    xu = xu.astype(jnp.float32)
    xg = xg.astype(jnp.float32)

    # ---- one-pass BatchNorm2d batch stats (training mode, biased variance) ----
    n = B * H * W
    sum_bc = jnp.sum(xu, axis=(2, 3))                          # (B, C)
    sumsq_c = jnp.sum(xu * xu, axis=(0, 2, 3))                 # (C,)
    mean_c = jnp.sum(sum_bc, axis=0) / n
    var_c = jnp.maximum(sumsq_c / n - mean_c * mean_c, 0.0)
    scale_c = params["bn_gamma"] * lax.rsqrt(var_c + BN_EPS)
    shift_c = params["bn_beta"] - mean_c * scale_c
    # spatial mean of BN(x) == affine of the spatial mean of x (mean commutes with affine)
    sp_mean = (sum_bc / (H * W)) * scale_c[None, :] + shift_c[None, :]     # (B, C)

    # ---- lane-dense flat-spatial geometry ----
    SP_valid = OH * W2                          # covers every valid output row
    SP_out = _round_up(SP_valid, 128)           # lane-dense output width
    SP_in = _round_up(SP_out + W2 + 1, 128)     # widest tap shift is W2 + 1

    # ---- channel-group split sized from a generation-aware VMEM budget ----
    try:
        vmem_cap = int(pltpu.get_tpu_info().vmem_capacity_bytes)
    except Exception:
        vmem_cap = 64 * 1024 * 1024
    budget = int(min(vmem_cap, 128 * 1024 * 1024) * 0.6)
    fixed = (2 * Cout * SP_out * 4                      # resident output accumulator (+slack)
             + 2 * 4 * Cout * _round_up(KC, 8) * isize  # tap-packed weights
             + 4 * KC * 4)                              # scale/shift
    avail = max(budget - fixed, 8 * SP_in * isize * 4)
    # ~2 pipeline buffers + ~2x headroom for the activated in-kernel temporary
    kcg_cap = max(8, int(avail // (SP_in * isize * 4)) // 8 * 8)
    if KC <= kcg_cap:
        n_groups, KCg = 1, KC
    else:
        KCg = kcg_cap
        n_groups = pl.cdiv(KC, KCg)
    KC_pad = n_groups * KCg

    # ---- space-to-depth (stride-2) rearrangement of the RAW input: 1x bytes, no im2col ----
    # sd-channel index = ph*(2C) + pw*C + c, with (ph, pw) the intra-stride offset.
    xsd = xu.reshape(B, C, H2, 2, W2, 2).transpose(0, 3, 5, 1, 2, 4).reshape(B, KC, SP)
    xsd = jnp.pad(xsd, ((0, 0), (0, KC_pad - KC), (0, SP_in - SP))).astype(compute_dtype)

    # ---- parameter packing:  w[co, c, 2qh+ph, 2qw+pw] -> wq[2qh+qw, co, ph*2C + pw*C + c] ----
    wq = params["conv_w"].astype(jnp.float32).reshape(Cout, C, 2, 2, 2, 2)
    wq = wq.transpose(2, 4, 0, 3, 5, 1).reshape(4, Cout, KC)
    wq = jnp.pad(wq, ((0, 0), (0, 0), (0, KC_pad - KC))).astype(compute_dtype)
    scale_sd = jnp.pad(jnp.tile(scale_c, 4), (0, KC_pad - KC)).reshape(KC_pad, 1)
    shift_sd = jnp.pad(jnp.tile(shift_c, 4), (0, KC_pad - KC)).reshape(KC_pad, 1)

    tap_shifts = (0, 1, W2, W2 + 1)             # (qh, qw) -> qh*W2 + qw on the flat axis
    kernel = _make_conv_kernel(Cout, SP_out, tap_shifts, n_groups, KCg, compute_dtype)

    flops = 2 * B * 4 * Cout * KC_pad * SP_out
    bytes_accessed = (B * KC_pad * SP_in * isize + 4 * Cout * KC_pad * isize
                      + B * Cout * SP_out * 4 + 2 * KC_pad * 4)

    y = pl.pallas_call(
        kernel,
        out_shape=jax.ShapeDtypeStruct((B, Cout, SP_out), jnp.float32),
        grid_spec=pltpu.PrefetchScalarGridSpec(
            num_scalar_prefetch=0,
            grid=(B, n_groups),
            in_specs=[
                pl.BlockSpec((1, KCg, SP_in), lambda b, g: (b, g, 0)),
                pl.BlockSpec((KCg, 1), lambda b, g: (g, 0)),
                pl.BlockSpec((KCg, 1), lambda b, g: (g, 0)),
                pl.BlockSpec((4, Cout, KC_pad), lambda b, g: (0, 0, 0)),
            ],
            out_specs=pl.BlockSpec((1, Cout, SP_out), lambda b, g: (b, 0, 0)),
        ),
        compiler_params=pltpu.CompilerParams(
            dimension_semantics=("parallel", "arbitrary"),
            vmem_limit_bytes=int(min(vmem_cap, 128 * 1024 * 1024) * 0.75)),
        cost_estimate=pl.CostEstimate(flops=flops, transcendentals=0,
                                      bytes_accessed=bytes_accessed),
    )(xsd, scale_sd, shift_sd, wq)

    # Valid conv outputs live at flat index oh*W2 + ow (oh < OH, ow < OW); the conv bias is
    # fused into this (small) epilogue slice so the kernel stays a pure accumulator.
    x4u = (y[:, :, :SP_valid].reshape(B, Cout, OH, W2)[:, :, :, :OW]
           + params["conv_b"].reshape(1, Cout, 1, 1))

    # ---- global path: FC2 + SELU on concat([spatial_mean(BN(xu)), xg]) -- plain XLA ----
    x2g = jnp.concatenate([sp_mean, xg], axis=1) @ params["fc2_w"].T + params["fc2_b"]
    x3g = SELU_SCALE * jnp.where(x2g > 0, x2g, SELU_ALPHA * jnp.expm1(x2g))
    # NOTE: FC1(xg) is computed but never used in the torch forward (dead path) -> omitted.
    return x4u, x3g


def reference_forward(xu, xg, params):
    """Pure-JAX reference mirroring the torch forward (training-mode BN)."""
    B, C, H, W = xu.shape
    g = params["bn_gamma"].reshape(1, C, 1, 1)
    b = params["bn_beta"].reshape(1, C, 1, 1)
    mean = jnp.mean(xu, axis=(0, 2, 3), keepdims=True)
    var = jnp.mean((xu - mean) ** 2, axis=(0, 2, 3), keepdims=True)
    x1u = (xu - mean) / jnp.sqrt(var + BN_EPS) * g + b
    x3u = jnp.where(x1u > 0, x1u, LRELU_SLOPE * x1u)
    x4u = lax.conv_general_dilated(
        x3u, params["conv_w"], window_strides=(2, 2), padding="VALID",
        dimension_numbers=("NCHW", "OIHW", "NCHW"),
    ) + params["conv_b"].reshape(1, -1, 1, 1)
    sp = jnp.mean(jnp.mean(x1u, axis=2), axis=2)
    x2g = jnp.concatenate([sp, xg], axis=1) @ params["fc2_w"].T + params["fc2_b"]
    x3g = SELU_SCALE * jnp.where(x2g > 0, x2g, SELU_ALPHA * jnp.expm1(x2g))
    return x4u, x3g


if __name__ == "__main__":
    B, Cin, Cout, H, W = 2, 4, 8, 16, 16
    key = jax.random.PRNGKey(0)
    ks = jax.random.split(key, 10)
    xu = jax.random.normal(ks[0], (B, Cin, H, W), jnp.float32)
    xg = jax.random.normal(ks[1], (B, Cin), jnp.float32)
    params = dict(
        bn_gamma=1.0 + 0.1 * jax.random.normal(ks[2], (Cin,), jnp.float32),
        bn_beta=0.1 * jax.random.normal(ks[3], (Cin,), jnp.float32),
        conv_w=0.1 * jax.random.normal(ks[4], (Cout, Cin, 4, 4), jnp.float32),
        conv_b=0.1 * jax.random.normal(ks[5], (Cout,), jnp.float32),
        fc1_w=0.1 * jax.random.normal(ks[6], (Cin, Cin), jnp.float32),   # unused (dead path)
        fc1_b=0.1 * jax.random.normal(ks[7], (Cin,), jnp.float32),       # unused (dead path)
        fc2_w=0.1 * jax.random.normal(ks[8], (Cout, 2 * Cin), jnp.float32),
        fc2_b=0.1 * jax.random.normal(ks[9], (Cout,), jnp.float32),
    )

    # f32 path (exact-parity default)
    fwd = jax.jit(lambda a, b: unitglobalnetdown_forward(a, b, params))
    x4u, x3g = fwd(xu, xg)
    jax.block_until_ready((x4u, x3g))

    r4u, r3g = reference_forward(xu, xg, params)
    OH = OW = (H - 4) // 2 + 1
    assert x4u.shape == (B, Cout, OH, OW)
    assert x3g.shape == (B, Cout)
    assert np.allclose(np.asarray(x4u), np.asarray(r4u), rtol=1e-3, atol=1e-3)
    assert np.allclose(np.asarray(x3g), np.asarray(r3g), rtol=1e-3, atol=1e-3)

    # bf16-streaming variant (halves the dominant HBM stream, MXU-native) -- looser parity.
    fwd_bf16 = jax.jit(lambda a, b: unitglobalnetdown_forward(a, b, params, use_bf16=True))
    x4u_b, x3g_b = fwd_bf16(xu, xg)
    jax.block_until_ready((x4u_b, x3g_b))
    assert x4u_b.shape == (B, Cout, OH, OW)
    assert np.allclose(np.asarray(x4u_b), np.asarray(r4u), rtol=5e-2, atol=5e-2)

    print("KERNEL_OK")
</pallas_src>

<mosaic_0001>
module attributes {stable_mosaic.version = 11 : i64} {
  func.func @kernel(%arg0: i32, %arg1: i32, %arg2: memref<1x16x256xf32, #tpu.memory_space<vmem>>, %arg3: memref<16x1xf32, #tpu.memory_space<vmem>>, %arg4: memref<16x1xf32, #tpu.memory_space<vmem>>, %arg5: memref<4x8x16xf32, #tpu.memory_space<vmem>>, %arg6: memref<1x8x128xf32, #tpu.memory_space<vmem>>) attributes {dimension_semantics = [#tpu.dimension_semantics<parallel>, #tpu.dimension_semantics<arbitrary>], iteration_bounds = array<i64: 2, 1>, scalar_prefetch = 0 : i64, scratch_operands = 0 : i64, tpu.core_type = #tpu.core_type<tc>, window_params = [{transform_indices = @transform_0, window_bounds = array<i64: 1, 16, 256>}, {transform_indices = @transform_1, window_bounds = array<i64: 16, 1>}, {transform_indices = @transform_2, window_bounds = array<i64: 16, 1>}, {pipeline_mode = #tpu.pipeline_mode<synchronous>, transform_indices = @transform_3, window_bounds = array<i64: 4, 8, 16>}, {transform_indices = @transform_4, window_bounds = array<i64: 1, 8, 128>}]} {
    %c0 = arith.constant 0 : index
    %c0_0 = arith.constant 0 : index
    %c0_1 = arith.constant 0 : index
    %0 = vector.load %arg2[%c0, %c0_0, %c0_1] : memref<1x16x256xf32, #tpu.memory_space<vmem>>, vector<1x16x256xf32>
    %1 = vector.shape_cast %0 : vector<1x16x256xf32> to vector<16x256xf32>
    %c0_2 = arith.constant 0 : index
    %c0_3 = arith.constant 0 : index
    %2 = vector.load %arg3[%c0_2, %c0_3] : memref<16x1xf32, #tpu.memory_space<vmem>>, vector<16x1xf32>
    %3 = vector.broadcast %2 : vector<16x1xf32> to vector<16x256xf32>
    %4 = arith.mulf %1, %3 : vector<16x256xf32>
    %c0_4 = arith.constant 0 : index
    %c0_5 = arith.constant 0 : index
    %5 = vector.load %arg4[%c0_4, %c0_5] : memref<16x1xf32, #tpu.memory_space<vmem>>, vector<16x1xf32>
    %6 = vector.broadcast %5 : vector<16x1xf32> to vector<16x256xf32>
    %7 = arith.addf %4, %6 : vector<16x256xf32>
    %cst = arith.constant 0.000000e+00 : f32
    %8 = vector.broadcast %cst : f32 to vector<16x256xf32>
    %9 = arith.cmpf ogt, %7, %8 : vector<16x256xf32>
    %cst_6 = arith.constant 2.000000e-01 : f32
    %10 = vector.broadcast %cst_6 : f32 to vector<16x256xf32>
    %11 = arith.mulf %10, %7 : vector<16x256xf32>
    %12 = arith.select %9, %7, %11 : vector<16x256xi1>, vector<16x256xf32>
    %cst_7 = arith.constant 0.000000e+00 : f32
    %13 = vector.broadcast %cst_7 : f32 to vector<8x128xf32>
    %c0_8 = arith.constant 0 : index
    %c0_9 = arith.constant 0 : index
    %c0_10 = arith.constant 0 : index
    %14 = vector.load %arg5[%c0_8, %c0_9, %c0_10] : memref<4x8x16xf32, #tpu.memory_space<vmem>>, vector<1x8x16xf32>
    %15 = vector.shape_cast %14 : vector<1x8x16xf32> to vector<8x16xf32>
    %16 = vector.extract_strided_slice %12 {offsets = [0, 0], sizes = [16, 128], strides = [1, 1]} : vector<16x256xf32> to vector<16x128xf32>
    %cst_11 = arith.constant dense<0.000000e+00> : vector<8x128xf32>
    %17 = tpu.matmul %15, %16, %cst_11 {dimension_numbers = #tpu.dot_dimension_numbers<[1], [0], [0], [1], [0, 0, 1, 1], [], []>} : vector<8x16xf32>, vector<16x128xf32>, vector<8x128xf32> -> vector<8x128xf32>
    %18 = arith.addf %13, %17 : vector<8x128xf32>
    %c1 = arith.constant 1 : index
    %c0_12 = arith.constant 0 : index
    %c0_13 = arith.constant 0 : index
    %19 = vector.load %arg5[%c1, %c0_12, %c0_13] : memref<4x8x16xf32, #tpu.memory_space<vmem>>, vector<1x8x16xf32>
    %20 = vector.shape_cast %19 : vector<1x8x16xf32> to vector<8x16xf32>
    %21 = vector.extract_strided_slice %12 {offsets = [0, 1], sizes = [16, 128], strides = [1, 1]} : vector<16x256xf32> to vector<16x128xf32>
    %cst_14 = arith.constant dense<0.000000e+00> : vector<8x128xf32>
    %22 = tpu.matmul %20, %21, %cst_14 {dimension_numbers = #tpu.dot_dimension_numbers<[1], [0], [0], [1], [0, 0, 1, 1], [], []>} : vector<8x16xf32>, vector<16x128xf32>, vector<8x128xf32> -> vector<8x128xf32>
    %23 = arith.addf %18, %22 : vector<8x128xf32>
    %c2 = arith.constant 2 : index
    %c0_15 = arith.constant 0 : index
    %c0_16 = arith.constant 0 : index
    %24 = vector.load %arg5[%c2, %c0_15, %c0_16] : memref<4x8x16xf32, #tpu.memory_space<vmem>>, vector<1x8x16xf32>
    %25 = vector.shape_cast %24 : vector<1x8x16xf32> to vector<8x16xf32>
    %26 = vector.extract_strided_slice %12 {offsets = [0, 8], sizes = [16, 128], strides = [1, 1]} : vector<16x256xf32> to vector<16x128xf32>
    %cst_17 = arith.constant dense<0.000000e+00> : vector<8x128xf32>
    %27 = tpu.matmul %25, %26, %cst_17 {dimension_numbers = #tpu.dot_dimension_numbers<[1], [0], [0], [1], [0, 0, 1, 1], [], []>} : vector<8x16xf32>, vector<16x128xf32>, vector<8x128xf32> -> vector<8x128xf32>
    %28 = arith.addf %23, %27 : vector<8x128xf32>
    %c3 = arith.constant 3 : index
    %c0_18 = arith.constant 0 : index
    %c0_19 = arith.constant 0 : index
    %29 = vector.load %arg5[%c3, %c0_18, %c0_19] : memref<4x8x16xf32, #tpu.memory_space<vmem>>, vector<1x8x16xf32>
    %30 = vector.shape_cast %29 : vector<1x8x16xf32> to vector<8x16xf32>
    %31 = vector.extract_strided_slice %12 {offsets = [0, 9], sizes = [16, 128], strides = [1, 1]} : vector<16x256xf32> to vector<16x128xf32>
    %cst_20 = arith.constant dense<0.000000e+00> : vector<8x128xf32>
    %32 = tpu.matmul %30, %31, %cst_20 {dimension_numbers = #tpu.dot_dimension_numbers<[1], [0], [0], [1], [0, 0, 1, 1], [], []>} : vector<8x16xf32>, vector<16x128xf32>, vector<8x128xf32> -> vector<8x128xf32>
    %33 = arith.addf %28, %32 : vector<8x128xf32>
    %c0_21 = arith.constant 0 : index
    %c0_22 = arith.constant 0 : index
    %c0_23 = arith.constant 0 : index
    %34 = vector.load %arg6[%c0_21, %c0_22, %c0_23] : memref<1x8x128xf32, #tpu.memory_space<vmem>>, vector<1x8x128xf32>
    %35 = vector.shape_cast %34 : vector<1x8x128xf32> to vector<8x128xf32>
    %36 = vector.shape_cast %33 : vector<8x128xf32> to vector<1x8x128xf32>
    tpu.vector_store %arg6[%c0_21, %c0_22, %c0_23], %36 {strides = array<i32>} : memref<1x8x128xf32, #tpu.memory_space<vmem>>, vector<1x8x128xf32>,
    return
  }
  func.func @transform_0(%arg0: i32, %arg1: i32) -> (i32, i32, i32) {
    %c0_i32 = arith.constant 0 : i32
    %c0_i32_0 = arith.constant 0 : i32
    return %arg0, %arg1, %c0_i32 : i32, i32, i32
  }
  func.func @transform_1(%arg0: i32, %arg1: i32) -> (i32, i32) {
    %c0_i32 = arith.constant 0 : i32
    %c0_i32_0 = arith.constant 0 : i32
    return %arg1, %c0_i32 : i32, i32
  }
  func.func @transform_2(%arg0: i32, %arg1: i32) -> (i32, i32) {
    %c0_i32 = arith.constant 0 : i32
    %c0_i32_0 = arith.constant 0 : i32
    return %arg1, %c0_i32 : i32, i32
  }
  func.func @transform_3(%arg0: i32, %arg1: i32) -> (i32, i32, i32) {
    %c0_i32 = arith.constant 0 : i32
    %c0_i32_0 = arith.constant 0 : i32
    %c0_i32_1 = arith.constant 0 : i32
    %c0_i32_2 = arith.constant 0 : i32
    return %c0_i32, %c0_i32_0, %c0_i32_1 : i32, i32, i32
  }
  func.func @transform_4(%arg0: i32, %arg1: i32) -> (i32, i32, i32) {
    %c0_i32 = arith.constant 0 : i32
    %c0_i32_0 = arith.constant 0 : i32
    %c0_i32_1 = arith.constant 0 : i32
    return %arg0, %c0_i32, %c0_i32_0 : i32, i32, i32
  }
}

</mosaic_0001>

<llo_original>
// kernel: tile.13
$region0: #{tile.13}
  #allocation0 [shape = 's32[1]{0}', space=sflag, size = 0x4, scoped, tag = 'scoped memory for tile.13']
  %s0 = inlined_call_operand.vmem [shape: f32[4], index: 0, kind: input, shape index: {}]
  %s1 = inlined_call_operand.vmem [shape: f32[4,4], index: 1, kind: output, shape index: {}]
  // Predicated region
  $region2: #{tile.13} parent=0 // pred_check
    _
  $region3: #{tile.13} parent=0 // pred_check_branch
    %3 = sbr.rel (0) target = $region5
  $region4: #{tile.13} parent=0 // pred_region
    _
  $region5: #{tile.13} parent=0 // pred_fallthru
    _
  %v4 = vld [vmem:[%s0] ss:$0 sm:$0xff]
  %5 = vst [vmem:[%s1] sm:$0xf] %v4

// kernel: _lambda_.1
$region0: #{_lambda_.1}
  #allocation0 [shape = 'u32[]', space=smem, size = 0x4, offset = 0x4, fixed_abs, tag = 'smem constant byte address 0x4 - core index']
  #allocation1 [shape = 'u32[144,128]{1,0:T(1,128)}', space=vmem, size = 0x12000, scoped, tag = 'internal scratch']
  %s0 = inlined_call_operand.vmem [shape: f32[2,16,256], index: 0, kind: input, shape index: {}]
  %s1 = inlined_call_operand.vmem [shape: f32[16,1], index: 1, kind: input, shape index: {}]
  %s2 = inlined_call_operand.vmem [shape: f32[16,1], index: 2, kind: input, shape index: {}]
  %s3 = inlined_call_operand.vmem [shape: f32[4,8,16], index: 3, kind: input, shape index: {}]
  %s4 = inlined_call_operand.vmem [shape: f32[2,8,128], index: 4, kind: output, shape index: {}]
  %s5 = sld [smem:[#allocation0]]
  $region49: #{_lambda_.1} parent=0
    _
  %s7 = ssub.s32 1, %s5
  %s8 = scalar_select 0, %s7, %s5
  loop: start=0, step=1, limit=4
  $region2: #{_lambda_.1} parent=0 // loop_pre_header
    _
  $region3: #{_lambda_.1} parent=0 // loop_header
    %s10 = sphi 0, %s14
    %p11 = scmp.ge.s32.totalorder %s10, 4
    %s17 = sphi 0, %s29
    %s18 = sphi 0, %s25
    %s19 = sphi 0, %s17
    %s20 = sphi 0, %s18
    %s21 = sphi 0, %s19
    %s22 = sphi 0, %s20
    %s34 = sphi 0, %s36
    %s37 = sphi 0, %s34
    %s38 = sphi 0, %s37
    %s54 = sphi 0, %s38
    %s60 = sphi 0, %s62
    %s63 = sphi 0, %s60
    %s64 = sphi 0, %s63
    %s80 = sphi 0, %s64
    %s86 = sphi 0, %s88
    %s89 = sphi 0, %s86
    %s90 = sphi 0, %s89
    %s106 = sphi 0, %s90
    %s110 = sphi 0, %s110
    %s112 = sphi 0, %s110
    %s113 = sphi 0, %s112
    %s127 = sphi 0, %s113
    %s133 = sphi 0, %s135
    %s136 = sphi 0, %s133
    %s137 = sphi 0, %s136
    %s153 = sphi 0, %s137
  $region4: #{_lambda_.1} parent=0 // loop_header_branch
    %13 = sbr.rel (%p11) target = $region8
  $region5: #{_lambda_.1} parent=0 // loop_body
    %s15 = ssub.s32 %s10, 1
    %s16 = ssub.s32 %s10, 2
    %s23 = sadd.s32 1, %s18
    %p24 = scmp.ge.s32.totalorder %s23, 1
    %s25 = scalar_select %p24, 0, %s23
    %s26 = sadd.s32 1, %s17
    %s27 = scalar_select %p24, %s26, %s17
    %p28 = scmp.ge.s32.totalorder %s27, 2
    %s29 = scalar_select %p28, 0, %s27
    %s30 = ssub.s32 %s17, %s29
    %s31 = ssub.s32 %s18, %s25
    %s32 = sor.u32 %s30, %s31
    %p33 = scmp.eq.s32.totalorder %s32, 0
    %s35 = sadd.s32 %s34, 1
    %s36 = scalar_select %p33, %s34, %s35
    %p39 = pneg %p33
    %p40 = scmp.eq.s32.totalorder %s10, 1
    %p41 = por %p39, %p40
    %p42 = scmp.ne.s32.totalorder %s34, %s37
    %p43 = scmp.eq.s32.totalorder %s10, 0
    %p44 = por %p42, %p43
    %p45 = scmp.ne.s32.totalorder %s34, %s37
    %p46 = scmp.eq.s32.totalorder %s15, 1
    %p47 = por %p45, %p46
    %p48 = scmp.ne.s32.totalorder %s37, %s38
    %p49 = scmp.eq.s32.totalorder %s15, 0
    %p50 = por %p48, %p49
    %p51 = scmp.ne.s32.totalorder %s37, %s38
    %p52 = scmp.eq.s32.totalorder %s16, 1
    %p53 = por %p51, %p52
    %p55 = scmp.ne.s32.totalorder %s38, %s54
    %p56 = scmp.eq.s32.totalorder %s16, 0
    %p57 = por %p55, %p56
    %s58 = ssub.s32 %s18, %s25
    %p59 = scmp.eq.s32.totalorder %s58, 0
    %s61 = sadd.s32 %s60, 1
    %s62 = scalar_select %p59, %s60, %s61
    %p65 = pneg %p59
    %p66 = scmp.eq.s32.totalorder %s10, 1
    %p67 = por %p65, %p66
    %p68 = scmp.ne.s32.totalorder %s60, %s63
    %p69 = scmp.eq.s32.totalorder %s10, 0
    %p70 = por %p68, %p69
    %p71 = scmp.ne.s32.totalorder %s60, %s63
    %p72 = scmp.eq.s32.totalorder %s15, 1
    %p73 = por %p71, %p72
    %p74 = scmp.ne.s32.totalorder %s63, %s64
    %p75 = scmp.eq.s32.totalorder %s15, 0
    %p76 = por %p74, %p75
    %p77 = scmp.ne.s32.totalorder %s63, %s64
    %p78 = scmp.eq.s32.totalorder %s16, 1
    %p79 = por %p77, %p78
    %p81 = scmp.ne.s32.totalorder %s64, %s80
    %p82 = scmp.eq.s32.totalorder %s16, 0
    %p83 = por %p81, %p82
    %s84 = ssub.s32 %s18, %s25
    %p85 = scmp.eq.s32.totalorder %s84, 0
    %s87 = sadd.s32 %s86, 1
    %s88 = scalar_select %p85, %s86, %s87
    %p91 = pneg %p85
    %p92 = scmp.eq.s32.totalorder %s10, 1
    %p93 = por %p91, %p92
    %p94 = scmp.ne.s32.totalorder %s86, %s89
    %p95 = scmp.eq.s32.totalorder %s10, 0
    %p96 = por %p94, %p95
    %p97 = scmp.ne.s32.totalorder %s86, %s89
    %p98 = scmp.eq.s32.totalorder %s15, 1
    %p99 = por %p97, %p98
    %p100 = scmp.ne.s32.totalorder %s89, %s90
    %p101 = scmp.eq.s32.totalorder %s15, 0
    %p102 = por %p100, %p101
    %p103 = scmp.ne.s32.totalorder %s89, %s90
    %p104 = scmp.eq.s32.totalorder %s16, 1
    %p105 = por %p103, %p104
    %p107 = scmp.ne.s32.totalorder %s90, %s106
    %p108 = scmp.eq.s32.totalorder %s16, 0
    %p109 = por %p107, %p108
    %s111 = sadd.s32 %s110, 1
    %p114 = scmp.eq.s32.totalorder %s10, 1
    %p115 = scmp.ne.s32.totalorder %s110, %s112
    %p116 = scmp.eq.s32.totalorder %s10, 0
    %p117 = por %p115, %p116
    %p118 = scmp.ne.s32.totalorder %s110, %s112
    %p119 = scmp.eq.s32.totalorder %s15, 1
    %p120 = por %p118, %p119
    %p121 = scmp.ne.s32.totalorder %s112, %s113
    %p122 = scmp.eq.s32.totalorder %s15, 0
    %p123 = por %p121, %p122
    %p124 = scmp.ne.s32.totalorder %s112, %s113
    %p125 = scmp.eq.s32.totalorder %s16, 1
    %p126 = por %p124, %p125
    %p128 = scmp.ne.s32.totalorder %s113, %s127
    %p129 = scmp.eq.s32.totalorder %s16, 0
    %p130 = por %p128, %p129
    %s131 = ssub.s32 %s17, %s29
    %p132 = scmp.eq.s32.totalorder %s131, 0
    %s134 = sadd.s32 %s133, 1
    %s135 = scalar_select %p132, %s133, %s134
    %p138 = pneg %p132
    %p139 = scmp.eq.s32.totalorder %s10, 1
    %p140 = por %p138, %p139
    %p141 = scmp.ne.s32.totalorder %s133, %s136
    %p142 = scmp.eq.s32.totalorder %s10, 0
    %p143 = por %p141, %p142
    %p144 = scmp.ne.s32.totalorder %s133, %s136
    %p145 = scmp.eq.s32.totalorder %s15, 1
    %p146 = por %p144, %p145
    %p147 = scmp.ne.s32.totalorder %s136, %s137
    %p148 = scmp.eq.s32.totalorder %s15, 0
    %p149 = por %p147, %p148
    %p150 = scmp.ne.s32.totalorder %s136, %s137
    %p151 = scmp.eq.s32.totalorder %s16, 1
    %p152 = por %p150, %p151
    %p154 = scmp.ne.s32.totalorder %s137, %s153
    %p155 = scmp.eq.s32.totalorder %s16, 0
    %p156 = por %p154, %p155
    %p157 = scmp.le.s32.totalorder 1, %s10
    %p158 = scmp.lt.s32.totalorder %s10, 3
    %p159 = pnand %p157, %p158
    %p160 = pneg %p159
    // Predicated region
    $region9: #{_lambda_.1} parent=5 // pred_check
      _
    $region10: #{_lambda_.1} parent=5 // pred_check_branch
      %162 = sbr.rel (%p159) target = $region12
    $region11: #{_lambda_.1} parent=5 // pred_region
      %s163 = ssub.s32 %s10, 1
      // Predicated region
      $region13: #{_lambda_.1} parent=11 // pred_check
        %p164 = pneg %p76
      $region14: #{_lambda_.1} parent=11 // pred_check_branch
        %166 = sbr.rel (%p164) target = $region16
      $region15: #{_lambda_.1} parent=11 // pred_region
        %s167 = smul.u32 2, %s20
        %p168 = scmp.lt.s32.totalorder %s167, 1
        %s169 = scalar_select %p168, %s167, 1
        %s170 = smul.addr %s169, 8
        %s171 = scalar_lea.vmem %s1, %s170
        %s172 = smul.u32 2, %s20
      $region16: #{_lambda_.1} parent=11 // pred_fallthru
        _
      // Predicated region
      $region17: #{_lambda_.1} parent=11 // pred_check
        %p173 = pneg %p102
      $region18: #{_lambda_.1} parent=11 // pred_check_branch
        %175 = sbr.rel (%p173) target = $region20
      $region19: #{_lambda_.1} parent=11 // pred_region
        %s176 = smul.u32 2, %s20
        %p177 = scmp.lt.s32.totalorder %s176, 1
        %s178 = scalar_select %p177, %s176, 1
        %s179 = smul.addr %s178, 8
        %s180 = scalar_lea.vmem %s2, %s179
        %s181 = smul.u32 2, %s20
      $region20: #{_lambda_.1} parent=11 // pred_fallthru
        _
      // Predicated region
      $region21: #{_lambda_.1} parent=11 // pred_check
        %p182 = pneg %p123
      $region22: #{_lambda_.1} parent=11 // pred_check_branch
        %184 = sbr.rel (%p182) target = $region24
      $region23: #{_lambda_.1} parent=11 // pred_region
        _
      $region24: #{_lambda_.1} parent=11 // pred_fallthru
        _
    $region12: #{_lambda_.1} parent=5 // pred_fallthru
      _
    %p185 = scmp.lt.s32.totalorder %s10, 2
    // Predicated region
    $region25: #{_lambda_.1} parent=5 // pred_check
      %p186 = pneg %p185
    $region26: #{_lambda_.1} parent=5 // pred_check_branch
      %188 = sbr.rel (%p186) target = $region28
    $region27: #{_lambda_.1} parent=5 // pred_region
      // Predicated region
      $region29: #{_lambda_.1} parent=27 // pred_check
        %p189 = pneg %p44
      $region30: #{_lambda_.1} parent=27 // pred_check_branch
        %191 = sbr.rel (%p189) target = $region32
      $region31: #{_lambda_.1} parent=27 // pred_region
        %s192 = smul.u32 2, %s18
        %p193 = scmp.lt.s32.totalorder %s17, 1
        %s194 = scalar_select %p193, %s17, 1
        %p195 = scmp.lt.s32.totalorder %s192, 1
        %s196 = scalar_select %p195, %s192, 1
        %s197 = smul.addr %s196, 2
        %s198 = smul.addr %s194, 4
        %s199 = sadd.s32 %s197, %s198
        %s200 = smul.addr %s199, 8
        %s201 = scalar_lea.vmem %s0, %s200
        %s202 = smul.u32 2, %s18
      $region32: #{_lambda_.1} parent=27 // pred_fallthru
        _
    $region28: #{_lambda_.1} parent=5 // pred_fallthru
      _
    %p203 = scmp.le.s32.totalorder 1, %s10
    %p204 = scmp.lt.s32.totalorder %s10, 3
    %p205 = pnand %p203, %p204
    %p206 = pneg %p205
    // Predicated region
    $region33: #{_lambda_.1} parent=5 // pred_check
      _
    $region34: #{_lambda_.1} parent=5 // pred_check_branch
      %208 = sbr.rel (%p205) target = $region36
    $region35: #{_lambda_.1} parent=5 // pred_region
      %s209 = ssub.s32 %s10, 1
      %s210 = smul.u32 2, %s20
      %p211 = scmp.lt.s32.totalorder %s19, 1
      %s212 = scalar_select %p211, %s19, 1
      %p213 = scmp.lt.s32.totalorder %s210, 1
      %s214 = scalar_select %p213, %s210, 1
      %s215 = smul.addr %s214, 2
      %s216 = smul.addr %s212, 4
      %s217 = sadd.s32 %s215, %s216
      %s218 = smul.addr %s217, 8
      %s219 = scalar_lea.vmem %s0, %s218
      %p220 = pneg %p50
      %p221 = pneg %p47
      %s222 = smul.u32 2, %s20
      %p223 = scmp.lt.s32.totalorder %s222, 1
      %s224 = scalar_select %p223, %s222, 1
      %s225 = smul.addr %s224, 8
      %s226 = scalar_lea.vmem %s1, %s225
      %p227 = pneg %p76
      %p228 = pneg %p73
      %s229 = smul.u32 2, %s20
      %p230 = scmp.lt.s32.totalorder %s229, 1
      %s231 = scalar_select %p230, %s229, 1
      %s232 = smul.addr %s231, 8
      %s233 = scalar_lea.vmem %s2, %s232
      %p234 = pneg %p102
      %p235 = pneg %p99
      %p236 = pneg %p123
      %p237 = pneg %p120
      %p238 = pneg %p149
      %p239 = pneg %p146
      %p240 = scmp.lt.s32.totalorder %s19, 1
      %s241 = scalar_select %p240, %s19, 1
      %s242 = smul.addr %s241, 8
      %s243 = scalar_lea.vmem %s4, %s242
      %s244 = smul.u32 2, %s20
      %p245 = scmp.lt.s32.totalorder %s19, 1
      %s246 = scalar_select %p245, %s19, 1
      %p247 = scmp.lt.s32.totalorder %s244, 1
      %s248 = scalar_select %p247, %s244, 1
      %s249 = smul.addr %s248, 2
      %s250 = smul.addr %s246, 4
      %s251 = sadd.s32 %s249, %s250
      %s252 = smul.addr %s251, 8
      %s253 = scalar_lea.vmem %s0, %s252
      %s254 = smul.u32 2, %s20
      %s255 = smul.u32 2, %s20
      %p256 = scmp.lt.s32.totalorder %s255, 1
      %s257 = scalar_select %p256, %s255, 1
      %s258 = smul.addr %s257, 8
      %s259 = scalar_lea.vmem %s1, %s258
      %s260 = smul.u32 2, %s20
      %s261 = smul.u32 2, %s20
      %p262 = scmp.lt.s32.totalorder %s261, 1
      %s263 = scalar_select %p262, %s261, 1
      %s264 = smul.addr %s263, 8
      %s265 = scalar_lea.vmem %s2, %s264
      %s266 = smul.u32 2, %s20
      %p267 = scmp.lt.s32.totalorder %s19, 1
      %s268 = scalar_select %p267, %s19, 1
      %s269 = smul.addr %s268, 8
      %s270 = scalar_lea.vmem %s4, %s269
      %v271 = vld [vmem:[%s253] sm:$0xff]
      %v272 = vld [vmem:[%s253 + $0x8] sm:$0xff]
      %v273 = vld [vmem:[%s253 + $0x10] sm:$0xff]
      %v274 = vld [vmem:[%s253 + $0x18] sm:$0xff]
      %v275 = vld [vmem:[%s259] sm:$0xff]
      %v276 = vld [vmem:[%s259 + $0x8] sm:$0xff]
      %278 = vset.pattern.permute.xlu0 0
      %279 = vperm.xlu0 %278, %v275
      %v280 = vpop.permute.xlu0 %279
      %283 = vset.pattern.permute.xlu0 0
      %284 = vperm.xlu0 %283, %v276
      %v285 = vpop.permute.xlu0 %284
      %v287 = vmul.f32 %v271, %v280
      %v288 = vmul.f32 %v272, %v280
      %v289 = vmul.f32 %v273, %v285
      %v290 = vmul.f32 %v274, %v285
      %v291 = vld [vmem:[%s265] sm:$0xff]
      %v292 = vld [vmem:[%s265 + $0x8] sm:$0xff]
      %294 = vset.pattern.permute.xlu0 0
      %295 = vperm.xlu0 %294, %v291
      %v296 = vpop.permute.xlu0 %295
      %299 = vset.pattern.permute.xlu0 0
      %300 = vperm.xlu0 %299, %v292
      %v301 = vpop.permute.xlu0 %300
      %v303 = vadd.f32 %v287, %v296
      %v304 = vadd.f32 %v288, %v296
      %v305 = vadd.f32 %v289, %v301
      %v306 = vadd.f32 %v290, %v301
      %vm307 = vcmp.gt.f32.partialorder %v303, 0.0
      %vm308 = vcmp.gt.f32.partialorder %v304, 0.0
      %vm309 = vcmp.gt.f32.partialorder %v305, 0.0
      %vm310 = vcmp.gt.f32.partialorder %v306, 0.0
      %v311 = vmul.f32 %v303, 0.2
      %v312 = vmul.f32 %v304, 0.2
      %v313 = vmul.f32 %v305, 0.2
      %v314 = vmul.f32 %v306, 0.2
      %v315 = vsel %vm307, %v303, %v311
      %v316 = vsel %vm308, %v304, %v312
      %v317 = vsel %vm309, %v305, %v313
      %v318 = vsel %vm310, %v306, %v314
      %v319 = vld [vmem:[%s3] sm:$0xff]
      %s320 = scalar_lea.vmem %s3, 8
      %v321 = vld [vmem:[%s320] sm:$0xff]
      %326 = vrot.lane.b32.xlu0 %v315, 127
      %v327 = vpop.permute.xlu0 %326
      %328 = vrot.lane.b32.xlu0 %v316, 127
      %v329 = vpop.permute.xlu0 %328
      %330 = vrot.lane.b32.xlu0 %v317, 127
      %v331 = vpop.permute.xlu0 %330
      %332 = vrot.lane.b32.xlu0 %v318, 127
      %v333 = vpop.permute.xlu0 %332
      %vm334 = vcmask 1039360
      %v335 = vsel %vm334, %v327, %v329
      %v336 = vsel %vm334, %v331, %v333
      %vm339 = vcmask 130048
      %v341 = vsel %vm339, %v321, 0
      %343 = vmatprep.subr.mxu0 0.0
      %344 = vmatpush1.msra.mxu0 0.0
      %345 = vmatprep.subr.mxu0 0.0
      %346 = vmatpush1.msra.mxu0 0.0
      %347 = vmatprep.subr.mxu0 0.0
      %348 = vmatpush1.msra.mxu0 0.0
      %349 = vmatprep.subr.mxu0 0.0
      %350 = vmatpush1.msra.mxu0 0.0
      %351 = vmatprep.subr.mxu0 0.0
      %352 = vmatpush1.msra.mxu0 0.0
      %353 = vmatprep.subr.mxu0 0.0
      %354 = vmatpush1.msra.mxu0 0.0
      %355 = vmatprep.subr.mxu0 0.0
      %356 = vmatpush1.msra.mxu0 0.0
      %357 = vmatprep.subr.mxu0 0.0
      %358 = vmatpush1.msra.mxu0 0.0
      %359 = vmatprep.subr.mxu0 0.0
      %360 = vmatpush1.msra.mxu0 0.0
      %361 = vmatprep.subr.mxu0 0.0
      %362 = vmatpush1.msra.mxu0 0.0
      %363 = vmatprep.subr.mxu0 0.0
      %364 = vmatpush1.msra.mxu0 0.0
      %365 = vmatprep.subr.mxu0 0.0
      %366 = vmatpush1.msra.mxu0 0.0
      %367 = vmatprep.subr.mxu0 0.0
      %368 = vmatpush1.msra.mxu0 0.0
      %369 = vmatprep.subr.mxu0 0.0
      %370 = vmatpush1.msra.mxu0 0.0
      %371 = vmatprep.subr.mxu0 0.0
      %372 = vmatpush1.msra.mxu0 %v336
      %373 = vmatprep.subr.mxu0 0.0
      %374 = vmatpush1.msra.mxu0 %v335
      %375 = vmatprep.subr.mxu0 0.0
      %376 = vmatpush2.msra.mxu0 0.0
      %377 = vmatprep.subr.mxu0 0.0
      %378 = vmatpush2.msra.mxu0 0.0
      %379 = vmatprep.subr.mxu0 0.0
      %380 = vmatpush2.msra.mxu0 0.0
      %381 = vmatprep.subr.mxu0 0.0
      %382 = vmatpush2.msra.mxu0 0.0
      %383 = vmatprep.subr.mxu0 0.0
      %384 = vmatpush2.msra.mxu0 0.0
      %385 = vmatprep.subr.mxu0 0.0
      %386 = vmatpush2.msra.mxu0 0.0
      %387 = vmatprep.subr.mxu0 0.0
      %388 = vmatpush2.msra.mxu0 0.0
      %389 = vmatprep.subr.mxu0 0.0
      %390 = vmatpush2.msra.mxu0 0.0
      %391 = vmatprep.subr.mxu0 0.0
      %392 = vmatpush2.msra.mxu0 0.0
      %393 = vmatprep.subr.mxu0 0.0
      %394 = vmatpush2.msra.mxu0 0.0
      %395 = vmatprep.subr.mxu0 0.0
      %396 = vmatpush2.msra.mxu0 0.0
      %397 = vmatprep.subr.mxu0 0.0
      %398 = vmatpush2.msra.mxu0 0.0
      %399 = vmatprep.subr.mxu0 0.0
      %400 = vmatpush2.msra.mxu0 0.0
      %401 = vmatprep.subr.mxu0 0.0
      %402 = vmatpush2.msra.mxu0 0.0
      %403 = vmatprep.subr.mxu0 0.0
      %404 = vmatpush2.msra.mxu0 0.0
      %405 = vmatprep.subr.mxu0 0.0
      %406 = vmatpush2.msra.mxu0 0.0
      %407 = vmatprep.mubr.f32.mxu0 0.0
      %408 = vmatmul.mubr.f32.gmra.mxu0 %v341
      %v409 = vpop.f32.mrf.mxu0
      %v410 = vadd.f32 0.0, %v409
      %v411 = vpop.f32.mrf.mxu0
      %412 = vdwg.mxu0
      %v414 = vsel %vm339, %v319, 0
      %416 = vmatprep.subr.mxu0 0.0
      %417 = vmatpush1.msra.mxu0 0.0
      %418 = vmatprep.subr.mxu0 0.0
      %419 = vmatpush1.msra.mxu0 0.0
      %420 = vmatprep.subr.mxu0 0.0
      %421 = vmatpush1.msra.mxu0 0.0
      %422 = vmatprep.subr.mxu0 0.0
      %423 = vmatpush1.msra.mxu0 0.0
      %424 = vmatprep.subr.mxu0 0.0
      %425 = vmatpush1.msra.mxu0 0.0
      %426 = vmatprep.subr.mxu0 0.0
      %427 = vmatpush1.msra.mxu0 0.0
      %428 = vmatprep.subr.mxu0 0.0
      %429 = vmatpush1.msra.mxu0 0.0
      %430 = vmatprep.subr.mxu0 0.0
      %431 = vmatpush1.msra.mxu0 0.0
      %432 = vmatprep.subr.mxu0 0.0
      %433 = vmatpush1.msra.mxu0 0.0
      %434 = vmatprep.subr.mxu0 0.0
      %435 = vmatpush1.msra.mxu0 0.0
      %436 = vmatprep.subr.mxu0 0.0
      %437 = vmatpush1.msra.mxu0 0.0
      %438 = vmatprep.subr.mxu0 0.0
      %439 = vmatpush1.msra.mxu0 0.0
      %440 = vmatprep.subr.mxu0 0.0
      %441 = vmatpush1.msra.mxu0 0.0
      %442 = vmatprep.subr.mxu0 0.0
      %443 = vmatpush1.msra.mxu0 0.0
      %444 = vmatprep.subr.mxu0 0.0
      %445 = vmatpush1.msra.mxu0 %v317
      %446 = vmatprep.subr.mxu0 0.0
      %447 = vmatpush1.msra.mxu0 %v315
      %448 = vmatprep.subr.mxu0 0.0
      %449 = vmatpush2.msra.mxu0 0.0
      %450 = vmatprep.subr.mxu0 0.0
      %451 = vmatpush2.msra.mxu0 0.0
      %452 = vmatprep.subr.mxu0 0.0
      %453 = vmatpush2.msra.mxu0 0.0
      %454 = vmatprep.subr.mxu0 0.0
      %455 = vmatpush2.msra.mxu0 0.0
      %456 = vmatprep.subr.mxu0 0.0
      %457 = vmatpush2.msra.mxu0 0.0
      %458 = vmatprep.subr.mxu0 0.0
      %459 = vmatpush2.msra.mxu0 0.0
      %460 = vmatprep.subr.mxu0 0.0
      %461 = vmatpush2.msra.mxu0 0.0
      %462 = vmatprep.subr.mxu0 0.0
      %463 = vmatpush2.msra.mxu0 0.0
      %464 = vmatprep.subr.mxu0 0.0
      %465 = vmatpush2.msra.mxu0 0.0
      %466 = vmatprep.subr.mxu0 0.0
      %467 = vmatpush2.msra.mxu0 0.0
      %468 = vmatprep.subr.mxu0 0.0
      %469 = vmatpush2.msra.mxu0 0.0
      %470 = vmatprep.subr.mxu0 0.0
      %471 = vmatpush2.msra.mxu0 0.0
      %472 = vmatprep.subr.mxu0 0.0
      %473 = vmatpush2.msra.mxu0 0.0
      %474 = vmatprep.subr.mxu0 0.0
      %475 = vmatpush2.msra.mxu0 0.0
      %476 = vmatprep.subr.mxu0 0.0
      %477 = vmatpush2.msra.mxu0 0.0
      %478 = vmatprep.subr.mxu0 0.0
      %479 = vmatpush2.msra.mxu0 0.0
      %480 = vmatprep.mubr.f32.mxu0 0.0
      %481 = vmatmul.mubr.f32.gmra.mxu0 %v414
      %v482 = vpop.f32.mrf.mxu0
      %v483 = vadd.f32 %v410, %v482
      %v484 = vpop.f32.mrf.mxu0
      %485 = vdwg.mxu0
      %s486 = scalar_lea.vmem %s3, 16
      %v487 = vld [vmem:[%s486] sm:$0xff]
      %488 = vrot.lane.b32.xlu0 %v315, 120
      %v489 = vpop.permute.xlu0 %488
      %490 = vrot.lane.b32.xlu0 %v316, 120
      %v491 = vpop.permute.xlu0 %490
      %492 = vrot.lane.b32.xlu0 %v317, 120
      %v493 = vpop.permute.xlu0 %492
      %494 = vrot.lane.b32.xlu0 %v318, 120
      %v495 = vpop.permute.xlu0 %494
      %vm496 = vcmask 982016
      %v497 = vsel %vm496, %v489, %v491
      %v498 = vsel %vm496, %v493, %v495
      %v502 = vsel %vm339, %v487, 0
      %504 = vmatprep.subr.mxu0 0.0
      %505 = vmatpush1.msra.mxu0 0.0
      %506 = vmatprep.subr.mxu0 0.0
      %507 = vmatpush1.msra.mxu0 0.0
      %508 = vmatprep.subr.mxu0 0.0
      %509 = vmatpush1.msra.mxu0 0.0
      %510 = vmatprep.subr.mxu0 0.0
      %511 = vmatpush1.msra.mxu0 0.0
      %512 = vmatprep.subr.mxu0 0.0
      %513 = vmatpush1.msra.mxu0 0.0
      %514 = vmatprep.subr.mxu0 0.0
      %515 = vmatpush1.msra.mxu0 0.0
      %516 = vmatprep.subr.mxu0 0.0
      %517 = vmatpush1.msra.mxu0 0.0
      %518 = vmatprep.subr.mxu0 0.0
      %519 = vmatpush1.msra.mxu0 0.0
      %520 = vmatprep.subr.mxu0 0.0
      %521 = vmatpush1.msra.mxu0 0.0
      %522 = vmatprep.subr.mxu0 0.0
      %523 = vmatpush1.msra.mxu0 0.0
      %524 = vmatprep.subr.mxu0 0.0
      %525 = vmatpush1.msra.mxu0 0.0
      %526 = vmatprep.subr.mxu0 0.0
      %527 = vmatpush1.msra.mxu0 0.0
      %528 = vmatprep.subr.mxu0 0.0
      %529 = vmatpush1.msra.mxu0 0.0
      %530 = vmatprep.subr.mxu0 0.0
      %531 = vmatpush1.msra.mxu0 0.0
      %532 = vmatprep.subr.mxu0 0.0
      %533 = vmatpush1.msra.mxu0 %v498
      %534 = vmatprep.subr.mxu0 0.0
      %535 = vmatpush1.msra.mxu0 %v497
      %536 = vmatprep.subr.mxu0 0.0
      %537 = vmatpush2.msra.mxu0 0.0
      %538 = vmatprep.subr.mxu0 0.0
      %539 = vmatpush2.msra.mxu0 0.0
      %540 = vmatprep.subr.mxu0 0.0
      %541 = vmatpush2.msra.mxu0 0.0
      %542 = vmatprep.subr.mxu0 0.0
      %543 = vmatpush2.msra.mxu0 0.0
      %544 = vmatprep.subr.mxu0 0.0
      %545 = vmatpush2.msra.mxu0 0.0
      %546 = vmatprep.subr.mxu0 0.0
      %547 = vmatpush2.msra.mxu0 0.0
      %548 = vmatprep.subr.mxu0 0.0
      %549 = vmatpush2.msra.mxu0 0.0
      %550 = vmatprep.subr.mxu0 0.0
      %551 = vmatpush2.msra.mxu0 0.0
      %552 = vmatprep.subr.mxu0 0.0
      %553 = vmatpush2.msra.mxu0 0.0
      %554 = vmatprep.subr.mxu0 0.0
      %555 = vmatpush2.msra.mxu0 0.0
      %556 = vmatprep.subr.mxu0 0.0
      %557 = vmatpush2.msra.mxu0 0.0
      %558 = vmatprep.subr.mxu0 0.0
      %559 = vmatpush2.msra.mxu0 0.0
      %560 = vmatprep.subr.mxu0 0.0
      %561 = vmatpush2.msra.mxu0 0.0
      %562 = vmatprep.subr.mxu0 0.0
      %563 = vmatpush2.msra.mxu0 0.0
      %564 = vmatprep.subr.mxu0 0.0
      %565 = vmatpush2.msra.mxu0 0.0
      %566 = vmatprep.subr.mxu0 0.0
      %567 = vmatpush2.msra.mxu0 0.0
      %568 = vmatprep.mubr.f32.mxu0 0.0
      %569 = vmatmul.mubr.f32.gmra.mxu0 %v502
      %v570 = vpop.f32.mrf.mxu0
      %v571 = vadd.f32 0.0, %v570
      %v572 = vpop.f32.mrf.mxu0
      %573 = vdwg.mxu0
      %v574 = vadd.f32 %v483, %v571
      %s575 = scalar_lea.vmem %s3, 24
      %v576 = vld [vmem:[%s575] sm:$0xff]
      %577 = vrot.lane.b32.xlu0 %v315, 119
      %v578 = vpop.permute.xlu0 %577
      %579 = vrot.lane.b32.xlu0 %v316, 119
      %v580 = vpop.permute.xlu0 %579
      %581 = vrot.lane.b32.xlu0 %v317, 119
      %v582 = vpop.permute.xlu0 %581
      %583 = vrot.lane.b32.xlu0 %v318, 119
      %v584 = vpop.permute.xlu0 %583
      %vm585 = vcmask 973824
      %v586 = vsel %vm585, %v578, %v580
      %v587 = vsel %vm585, %v582, %v584
      %v591 = vsel %vm339, %v576, 0
      %593 = vmatprep.subr.mxu0 0.0
      %594 = vmatpush1.msra.mxu0 0.0
      %595 = vmatprep.subr.mxu0 0.0
      %596 = vmatpush1.msra.mxu0 0.0
      %597 = vmatprep.subr.mxu0 0.0
      %598 = vmatpush1.msra.mxu0 0.0
      %599 = vmatprep.subr.mxu0 0.0
      %600 = vmatpush1.msra.mxu0 0.0
      %601 = vmatprep.subr.mxu0 0.0
      %602 = vmatpush1.msra.mxu0 0.0
      %603 = vmatprep.subr.mxu0 0.0
      %604 = vmatpush1.msra.mxu0 0.0
      %605 = vmatprep.subr.mxu0 0.0
      %606 = vmatpush1.msra.mxu0 0.0
      %607 = vmatprep.subr.mxu0 0.0
      %608 = vmatpush1.msra.mxu0 0.0
      %609 = vmatprep.subr.mxu0 0.0
      %610 = vmatpush1.msra.mxu0 0.0
      %611 = vmatprep.subr.mxu0 0.0
      %612 = vmatpush1.msra.mxu0 0.0
      %613 = vmatprep.subr.mxu0 0.0
      %614 = vmatpush1.msra.mxu0 0.0
      %615 = vmatprep.subr.mxu0 0.0
      %616 = vmatpush1.msra.mxu0 0.0
      %617 = vmatprep.subr.mxu0 0.0
      %618 = vmatpush1.msra.mxu0 0.0
      %619 = vmatprep.subr.mxu0 0.0
      %620 = vmatpush1.msra.mxu0 0.0
      %621 = vmatprep.subr.mxu0 0.0
      %622 = vmatpush1.msra.mxu0 %v587
      %623 = vmatprep.subr.mxu0 0.0
      %624 = vmatpush1.msra.mxu0 %v586
      %625 = vmatprep.subr.mxu0 0.0
      %626 = vmatpush2.msra.mxu0 0.0
      %627 = vmatprep.subr.mxu0 0.0
      %628 = vmatpush2.msra.mxu0 0.0
      %629 = vmatprep.subr.mxu0 0.0
      %630 = vmatpush2.msra.mxu0 0.0
      %631 = vmatprep.subr.mxu0 0.0
      %632 = vmatpush2.msra.mxu0 0.0
      %633 = vmatprep.subr.mxu0 0.0
      %634 = vmatpush2.msra.mxu0 0.0
      %635 = vmatprep.subr.mxu0 0.0
      %636 = vmatpush2.msra.mxu0 0.0
      %637 = vmatprep.subr.mxu0 0.0
      %638 = vmatpush2.msra.mxu0 0.0
      %639 = vmatprep.subr.mxu0 0.0
      %640 = vmatpush2.msra.mxu0 0.0
      %641 = vmatprep.subr.mxu0 0.0
      %642 = vmatpush2.msra.mxu0 0.0
      %643 = vmatprep.subr.mxu0 0.0
      %644 = vmatpush2.msra.mxu0 0.0
      %645 = vmatprep.subr.mxu0 0.0
      %646 = vmatpush2.msra.mxu0 0.0
      %647 = vmatprep.subr.mxu0 0.0
      %648 = vmatpush2.msra.mxu0 0.0
      %649 = vmatprep.subr.mxu0 0.0
      %650 = vmatpush2.msra.mxu0 0.0
      %651 = vmatprep.subr.mxu0 0.0
      %652 = vmatpush2.msra.mxu0 0.0
      %653 = vmatprep.subr.mxu0 0.0
      %654 = vmatpush2.msra.mxu0 0.0
      %655 = vmatprep.subr.mxu0 0.0
      %656 = vmatpush2.msra.mxu0 0.0
      %657 = vmatprep.mubr.f32.mxu0 0.0
      %658 = vmatmul.mubr.f32.gmra.mxu0 %v591
      %v659 = vpop.f32.mrf.mxu0
      %v660 = vadd.f32 0.0, %v659
      %v661 = vpop.f32.mrf.mxu0
      %662 = vdwg.mxu0
      %v663 = vadd.f32 %v574, %v660
      %664 = vst [vmem:[%s270] sm:$0xff] %v663
      %p665 = scmp.lt.s32.totalorder %s19, 1
      %s666 = scalar_select %p665, %s19, 1
      %s667 = smul.addr %s666, 8
      %s668 = scalar_lea.vmem %s4, %s667
      // Predicated region
      $region37: #{_lambda_.1} parent=35 // pred_check
        %p669 = pneg %p146
      $region38: #{_lambda_.1} parent=35 // pred_check_branch
        %671 = sbr.rel (%p669) target = $region40
      $region39: #{_lambda_.1} parent=35 // pred_region
        _
      $region40: #{_lambda_.1} parent=35 // pred_fallthru
        _
    $region36: #{_lambda_.1} parent=5 // pred_fallthru
      _
    %p672 = scmp.le.s32.totalorder 2, %s10
    // Predicated region
    $region41: #{_lambda_.1} parent=5 // pred_check
      %p673 = pneg %p672
    $region42: #{_lambda_.1} parent=5 // pred_check_branch
      %675 = sbr.rel (%p673) target = $region44
    $region43: #{_lambda_.1} parent=5 // pred_region
      %s676 = ssub.s32 %s10, 2
      // Predicated region
      $region45: #{_lambda_.1} parent=43 // pred_check
        %p677 = pneg %p152
      $region46: #{_lambda_.1} parent=43 // pred_check_branch
        %679 = sbr.rel (%p677) target = $region48
      $region47: #{_lambda_.1} parent=43 // pred_region
        %p680 = scmp.lt.s32.totalorder %s21, 1
        %s681 = scalar_select %p680, %s21, 1
        %s682 = smul.addr %s681, 8
        %s683 = scalar_lea.vmem %s4, %s682
      $region48: #{_lambda_.1} parent=43 // pred_fallthru
        _
    $region44: #{_lambda_.1} parent=5 // pred_fallthru
      _
  $region6: #{_lambda_.1} parent=0 // loop_footer
    %s14 = sadd.s32 1, %s10
  $region7: #{_lambda_.1} parent=0 // loop_footer_branch
    %9 = sbr.rel target = $region3
  $region8: #{_lambda_.1} parent=0 // loop_exit
    _

</llo_original>
